<compile_context>
chip_gen: v7x
topology: tpu7x:2x2x1
jax: 0.10.0
libtpu: 0.0.40
codegen_flags: <defaults>
</compile_context>

<pallas_src>
import math
import functools

import jax
import jax.numpy as jnp
from jax.experimental import pallas as pl
from jax.experimental.pallas import tpu as pltpu


_VMEM_LIMIT = 32 * 1024 * 1024          # scoped-VMEM limit for every call (safe on v5e/v6e/v7x)
_TARGET_BLOCK_BYTES = 2 * 1024 * 1024   # ~2 MiB x blocks -> ~85%+ of HBM roofline
_MAX_BLOCK_ELEMS = 1024 * 1024          # cap TR*D so f32 temps + double buffers fit the limit
_FUSED_BN_BYTES = 4 * 1024 * 1024       # f32-equivalent x footprint for the VMEM-resident BN path


def _round_up(a, m):
    return (a + m - 1) // m * m


def _pick_row_tile(n_rows, d, itemsize):
    """Row tile: big enough to amortize per-grid-step overhead and hit the HBM roofline,
    small enough that in/out double-buffers plus f32 temporaries fit under _VMEM_LIMIT."""
    tr = _TARGET_BLOCK_BYTES // max(d * itemsize, 1)
    tr = min(tr, _MAX_BLOCK_ELEMS // max(d, 1))
    tr = max(8, (tr // 8) * 8)
    if tr >= n_rows:
        return n_rows                    # single full block (always a legal block shape)
    return tr


# ---------- batch mode, small-N fast path: stats + apply fully VMEM-resident ----------
def _bn_fused_kernel(x_ref, w_ref, b_ref, o_ref, *, n_rows, eps):
    x = x_ref[...].astype(jnp.float32)                       # whole (N, D) resident in VMEM
    inv_n = 1.0 / n_rows
    mean = jnp.sum(x, axis=0, keepdims=True) * inv_n          # (1, D)
    var = jnp.maximum(jnp.sum(x * x, axis=0, keepdims=True) * inv_n - mean * mean, 0.0)
    scale = jax.lax.rsqrt(var + eps) * w_ref[...].astype(jnp.float32)   # EUP rsqrt
    shift = b_ref[...].astype(jnp.float32) - mean * scale
    o_ref[...] = (x * scale + shift).astype(o_ref.dtype)


# ---------- batch mode, pass 1: per-core partial sum / sumsq over row tiles ----------
def _bn_stats_kernel(x_ref, sum_ref, sq_ref, *, n_rows, row_tile, tiles_per_core, needs_mask):
    c = pl.program_id(0)                                      # core-parallel axis
    j = pl.program_id(1)                                      # serial accumulation axis

    @pl.when(j == 0)
    def _():
        sum_ref[...] = jnp.zeros_like(sum_ref)
        sq_ref[...] = jnp.zeros_like(sq_ref)

    x = x_ref[...].astype(jnp.float32)                        # (TR, D)
    if needs_mask:
        # zero rows past the end of the array (tail block and clamped duplicate tiles)
        start = (c * tiles_per_core + j) * row_tile
        rows = jax.lax.broadcasted_iota(jnp.int32, (x.shape[0], 1), 0)
        x = jnp.where(rows < (n_rows - start), x, 0.0)

    sum_ref[...] += jnp.sum(x, axis=0, keepdims=True)          # (1, D)
    sq_ref[...] += jnp.sum(x * x, axis=0, keepdims=True)       # (1, D)


# ---------- batch mode, pass 2: y = x * scale + shift (scale/shift precomputed) ----------
def _bn_apply_kernel(x_ref, scale_ref, shift_ref, o_ref):
    x = x_ref[...].astype(jnp.float32)                         # (TR, D)
    o_ref[...] = (x * scale_ref[...] + shift_ref[...]).astype(o_ref.dtype)


# ---------- layer mode: per-row mean/var over the feature dim ----------
def _ln_kernel(x_ref, w_ref, b_ref, o_ref, *, eps):
    x = x_ref[...].astype(jnp.float32)                         # (TR, D)
    mean = jnp.mean(x, axis=-1, keepdims=True)                 # (TR, 1)
    xc = x - mean
    var = jnp.mean(xc * xc, axis=-1, keepdims=True)            # centered form: more robust
    y = xc * jax.lax.rsqrt(var + eps) * w_ref[...].astype(jnp.float32) \
        + b_ref[...].astype(jnp.float32)
    o_ref[...] = y.astype(o_ref.dtype)


def normalization_forward(x, weight, bias, normalization="batch", *, eps=None, row_tile=None):
    """x: (..., D); weight/bias: (D,). Mirrors Normalization.forward."""
    orig_shape = x.shape
    D = int(orig_shape[-1])
    N = 1
    for s in orig_shape[:-1]:
        N *= int(s)

    if eps is None:
        eps = 1e-5 if normalization == "batch" else 1e-6
    eps = float(eps)

    x2 = x.reshape(N, D)
    w2 = weight.reshape(1, D)
    b2 = bias.reshape(1, D)

    if row_tile is None:
        TR = _pick_row_tile(N, D, x2.dtype.itemsize)
    else:
        TR = _round_up(int(row_tile), 8)
        if TR >= N:
            TR = N
    NT = (N + TR - 1) // TR                                    # ceil-div grid, no padding copies

    cparams_rows = pltpu.CompilerParams(dimension_semantics=("parallel",),
                                        vmem_limit_bytes=_VMEM_LIMIT)

    if normalization == "batch":
        fused = (row_tile is None) and (N * D * 4 <= _FUSED_BN_BYTES)
        if fused:
            # one read + one write of x, single launch
            y2 = pl.pallas_call(
                functools.partial(_bn_fused_kernel, n_rows=float(N), eps=eps),
                out_shape=jax.ShapeDtypeStruct((N, D), x.dtype),
                grid_spec=pltpu.PrefetchScalarGridSpec(
                    num_scalar_prefetch=0,
                    grid=(1,),
                    in_specs=[pl.BlockSpec((N, D), lambda i: (0, 0)),
                              pl.BlockSpec((1, D), lambda i: (0, 0)),
                              pl.BlockSpec((1, D), lambda i: (0, 0))],
                    out_specs=pl.BlockSpec((N, D), lambda i: (0, 0))),
                compiler_params=pltpu.CompilerParams(
                    dimension_semantics=("arbitrary",),
                    vmem_limit_bytes=_VMEM_LIMIT),
            )(x2, w2, b2)
        else:
            # pass 1: partial sums, split over 2 "cores" (sharded across TCs on v7x)
            NC = 2 if NT >= 2 else 1
            NTC = (NT + NC - 1) // NC
            needs_mask = (N % TR != 0) or (NC * NTC != NT)
            if NC * NTC != NT:
                x_map = lambda c, j: (jnp.minimum(c * NTC + j, NT - 1), 0)
            else:
                x_map = lambda c, j: (c * NTC + j, 0)

            psum, psq = pl.pallas_call(
                functools.partial(_bn_stats_kernel, n_rows=N, row_tile=TR,
                                  tiles_per_core=NTC, needs_mask=needs_mask),
                out_shape=(jax.ShapeDtypeStruct((NC, D), jnp.float32),
                           jax.ShapeDtypeStruct((NC, D), jnp.float32)),
                grid_spec=pltpu.PrefetchScalarGridSpec(
                    num_scalar_prefetch=0,
                    grid=(NC, NTC),
                    in_specs=[pl.BlockSpec((TR, D), x_map)],
                    out_specs=(pl.BlockSpec((1, D), lambda c, j: (c, 0)),
                               pl.BlockSpec((1, D), lambda c, j: (c, 0)))),
                compiler_params=pltpu.CompilerParams(
                    dimension_semantics=("parallel", "arbitrary"),
                    vmem_limit_bytes=_VMEM_LIMIT),
            )(x2)

            # tiny (NC, D) finalize in plain XLA: combine partials and fold weight/bias
            # into fused scale/shift so the apply kernel is a single x*scale + shift.
            inv_n = 1.0 / float(N)
            mean = jnp.sum(psum, axis=0, keepdims=True) * inv_n
            var = jnp.maximum(jnp.sum(psq, axis=0, keepdims=True) * inv_n - mean * mean, 0.0)
            scale = jax.lax.rsqrt(var + eps) * w2.astype(jnp.float32)     # (1, D)
            shift = b2.astype(jnp.float32) - mean * scale                 # (1, D)

            # pass 2: apply (row axis parallel -> core-sharded on v7x)
            y2 = pl.pallas_call(
                _bn_apply_kernel,
                out_shape=jax.ShapeDtypeStruct((N, D), x.dtype),
                grid_spec=pltpu.PrefetchScalarGridSpec(
                    num_scalar_prefetch=0,
                    grid=(NT,),
                    in_specs=[pl.BlockSpec((TR, D), lambda j: (j, 0)),    # x tile
                              pl.BlockSpec((1, D), lambda j: (0, 0)),     # scale (resident)
                              pl.BlockSpec((1, D), lambda j: (0, 0))],    # shift (resident)
                    out_specs=pl.BlockSpec((TR, D), lambda j: (j, 0))),
                compiler_params=cparams_rows,
            )(x2, scale, shift)
    else:
        y2 = pl.pallas_call(
            functools.partial(_ln_kernel, eps=eps),
            out_shape=jax.ShapeDtypeStruct((N, D), x.dtype),
            grid_spec=pltpu.PrefetchScalarGridSpec(
                num_scalar_prefetch=0,
                grid=(NT,),
                in_specs=[pl.BlockSpec((TR, D), lambda j: (j, 0)),
                          pl.BlockSpec((1, D), lambda j: (0, 0)),
                          pl.BlockSpec((1, D), lambda j: (0, 0))],
                out_specs=pl.BlockSpec((TR, D), lambda j: (j, 0))),
            compiler_params=cparams_rows,
        )(x2, w2, b2)

    return y2.reshape(orig_shape)


if __name__ == "__main__":
    # (batch, timesz, embed_dim) -- embed_dim=128 keeps the lane dim dense.
    EMBED, TIMESZ, BATCH = 128, 20, 4

    key = jax.random.PRNGKey(0)
    kx, kw1, kb1, kw2, kb2 = jax.random.split(key, 5)

    x = jax.random.normal(kx, (BATCH, TIMESZ, EMBED), dtype=jnp.float32)

    # init_parameters(): uniform(-stdv, stdv) with stdv = 1/sqrt(param.size(-1)) = 1/sqrt(D)
    stdv = 1.0 / math.sqrt(EMBED)
    w_bn = jax.random.uniform(kw1, (EMBED,), minval=-stdv, maxval=stdv, dtype=jnp.float32)
    b_bn = jax.random.uniform(kb1, (EMBED,), minval=-stdv, maxval=stdv, dtype=jnp.float32)
    w_ln = jax.random.uniform(kw2, (EMBED,), minval=-stdv, maxval=stdv, dtype=jnp.float32)
    b_ln = jax.random.uniform(kb2, (EMBED,), minval=-stdv, maxval=stdv, dtype=jnp.float32)

    xf = x.reshape(-1, EMBED)
    mu = xf.mean(axis=0)
    var = ((xf - mu) ** 2).mean(axis=0)                        # biased, as in BN training
    ref_bn = ((xf - mu) / jnp.sqrt(var + 1e-5) * w_bn + b_bn).reshape(x.shape)

    # --- 'batch' mode, VMEM-resident fused fast path (default tiling) ---
    out_bn = normalization_forward(x, w_bn, b_bn, normalization="batch")
    out_bn = jax.block_until_ready(out_bn)
    assert out_bn.shape == x.shape
    assert jnp.max(jnp.abs(out_bn - ref_bn)) < 1e-4

    # --- 'batch' mode, tiled two-pass path (row_tile=32 exercises the core-split stats,
    #     clamped duplicate tile, tail masking and partial output blocks) ---
    out_bn_t = normalization_forward(x, w_bn, b_bn, normalization="batch", row_tile=32)
    out_bn_t = jax.block_until_ready(out_bn_t)
    assert jnp.max(jnp.abs(out_bn_t - ref_bn)) < 1e-4

    mu_l = x.mean(axis=-1, keepdims=True)
    var_l = ((x - mu_l) ** 2).mean(axis=-1, keepdims=True)
    ref_ln = (x - mu_l) / jnp.sqrt(var_l + 1e-6) * w_ln + b_ln

    # --- 'layer' mode, default (single full block) and tiled with a partial tail block ---
    out_ln = normalization_forward(x, w_ln, b_ln, normalization="layer")
    out_ln = jax.block_until_ready(out_ln)
    assert jnp.max(jnp.abs(out_ln - ref_ln)) < 1e-4

    out_ln_t = normalization_forward(x, w_ln, b_ln, normalization="layer", row_tile=32)
    out_ln_t = jax.block_until_ready(out_ln_t)
    assert jnp.max(jnp.abs(out_ln_t - ref_ln)) < 1e-4

    print("KERNEL_OK")
</pallas_src>

<mosaic_0001>
module attributes {stable_mosaic.version = 11 : i64} {
  func.func @_bn_fused_kernel(%arg0: i32, %arg1: memref<80x128xf32, #tpu.memory_space<vmem>>, %arg2: memref<1x128xf32, #tpu.memory_space<vmem>>, %arg3: memref<1x128xf32, #tpu.memory_space<vmem>>, %arg4: memref<80x128xf32, #tpu.memory_space<vmem>>) attributes {dimension_semantics = [#tpu.dimension_semantics<arbitrary>], iteration_bounds = array<i64: 1>, scalar_prefetch = 0 : i64, scratch_operands = 0 : i64, tpu.core_type = #tpu.core_type<tc>, window_params = [{pipeline_mode = #tpu.pipeline_mode<synchronous>, transform_indices = @transform_0, window_bounds = array<i64: 80, 128>}, {pipeline_mode = #tpu.pipeline_mode<synchronous>, transform_indices = @transform_1, window_bounds = array<i64: 1, 128>}, {pipeline_mode = #tpu.pipeline_mode<synchronous>, transform_indices = @transform_2, window_bounds = array<i64: 1, 128>}, {pipeline_mode = #tpu.pipeline_mode<synchronous>, transform_indices = @transform_3, window_bounds = array<i64: 80, 128>}]} {
    %c0 = arith.constant 0 : index
    %c0_0 = arith.constant 0 : index
    %0 = vector.load %arg1[%c0, %c0_0] : memref<80x128xf32, #tpu.memory_space<vmem>>, vector<80x128xf32>
    %cst = arith.constant dense<0.000000e+00> : vector<128xf32>
    %1 = vector.multi_reduction <add>, %0, %cst [0] : vector<80x128xf32> to vector<128xf32>
    %2 = vector.shape_cast %1 : vector<128xf32> to vector<1x128xf32>
    %cst_1 = arith.constant 1.250000e-02 : f32
    %3 = vector.broadcast %cst_1 : f32 to vector<1x128xf32>
    %4 = arith.mulf %2, %3 : vector<1x128xf32>
    %5 = arith.mulf %0, %0 : vector<80x128xf32>
    %cst_2 = arith.constant dense<0.000000e+00> : vector<128xf32>
    %6 = vector.multi_reduction <add>, %5, %cst_2 [0] : vector<80x128xf32> to vector<128xf32>
    %7 = vector.shape_cast %6 : vector<128xf32> to vector<1x128xf32>
    %cst_3 = arith.constant 1.250000e-02 : f32
    %8 = vector.broadcast %cst_3 : f32 to vector<1x128xf32>
    %9 = arith.mulf %7, %8 : vector<1x128xf32>
    %10 = arith.mulf %4, %4 : vector<1x128xf32>
    %11 = arith.subf %9, %10 : vector<1x128xf32>
    %cst_4 = arith.constant 0.000000e+00 : f32
    %12 = vector.broadcast %cst_4 : f32 to vector<1x128xf32>
    %13 = arith.maximumf %11, %12 : vector<1x128xf32>
    %cst_5 = arith.constant 9.99999974E-6 : f32
    %14 = vector.broadcast %cst_5 : f32 to vector<1x128xf32>
    %15 = arith.addf %13, %14 : vector<1x128xf32>
    %16 = math.rsqrt %15 : vector<1x128xf32>
    %c0_6 = arith.constant 0 : index
    %c0_7 = arith.constant 0 : index
    %17 = vector.load %arg2[%c0_6, %c0_7] : memref<1x128xf32, #tpu.memory_space<vmem>>, vector<1x128xf32>
    %18 = arith.mulf %16, %17 : vector<1x128xf32>
    %c0_8 = arith.constant 0 : index
    %c0_9 = arith.constant 0 : index
    %19 = vector.load %arg3[%c0_8, %c0_9] : memref<1x128xf32, #tpu.memory_space<vmem>>, vector<1x128xf32>
    %20 = arith.mulf %4, %18 : vector<1x128xf32>
    %21 = arith.subf %19, %20 : vector<1x128xf32>
    %22 = vector.broadcast %18 : vector<1x128xf32> to vector<80x128xf32>
    %23 = arith.mulf %0, %22 : vector<80x128xf32>
    %24 = vector.broadcast %21 : vector<1x128xf32> to vector<80x128xf32>
    %25 = arith.addf %23, %24 : vector<80x128xf32>
    %c0_10 = arith.constant 0 : index
    %c0_11 = arith.constant 0 : index
    %26 = vector.load %arg4[%c0_10, %c0_11] : memref<80x128xf32, #tpu.memory_space<vmem>>, vector<80x128xf32>
    tpu.vector_store %arg4[%c0_10, %c0_11], %25 {strides = array<i32>} : memref<80x128xf32, #tpu.memory_space<vmem>>, vector<80x128xf32>,
    return
  }
  func.func @transform_0(%arg0: i32) -> (i32, i32) {
    %c0_i32 = arith.constant 0 : i32
    %c0_i32_0 = arith.constant 0 : i32
    %c0_i32_1 = arith.constant 0 : i32
    return %c0_i32, %c0_i32_0 : i32, i32
  }
  func.func @transform_1(%arg0: i32) -> (i32, i32) {
    %c0_i32 = arith.constant 0 : i32
    %c0_i32_0 = arith.constant 0 : i32
    %c0_i32_1 = arith.constant 0 : i32
    return %c0_i32, %c0_i32_0 : i32, i32
  }
  func.func @transform_2(%arg0: i32) -> (i32, i32) {
    %c0_i32 = arith.constant 0 : i32
    %c0_i32_0 = arith.constant 0 : i32
    %c0_i32_1 = arith.constant 0 : i32
    return %c0_i32, %c0_i32_0 : i32, i32
  }
  func.func @transform_3(%arg0: i32) -> (i32, i32) {
    %c0_i32 = arith.constant 0 : i32
    %c0_i32_0 = arith.constant 0 : i32
    %c0_i32_1 = arith.constant 0 : i32
    return %c0_i32, %c0_i32_0 : i32, i32
  }
}

</mosaic_0001>

<llo_original>
// kernel: tpu_custom_call.1
$region0: #{tpu_custom_call.1}
  #allocation0 [shape = 'u32[]', space=smem, size = 0x4, offset = 0x4, fixed_abs, tag = 'smem constant byte address 0x4 - core index']
  #allocation1 [shape = 'u32[144,128]{1,0:T(1,128)}', space=vmem, size = 0x12000, scoped, tag = 'internal scratch']
  %s0 = inlined_call_operand.hbm [shape: f32[80,128], index: 0, kind: input, shape index: {}]
  %s1 = inlined_call_operand.vmem [shape: f32[1,128], index: 1, kind: input, shape index: {}]
  %s2 = inlined_call_operand.vmem [shape: f32[1,128], index: 2, kind: input, shape index: {}]
  %s3 = inlined_call_operand.hbm [shape: f32[80,128], index: 3, kind: output, shape index: {}]
  %s4 = sld [smem:[#allocation0]]
  $region26: #{tpu_custom_call.1} parent=0
    _
  %s6 = ssub.s32 1, %s4
  %s7 = scalar_select 0, %s6, %s4
  $region1: #{tpu_custom_call.1} parent=0
    #allocation2 [shape = 'u8[40960]{0}', space=vmem, size = 0xa000, scoped, tag = 'input window, operand 0, single buffered']
    #allocation3 [shape = 's32[1]{0}', space=sflag, size = 0x4, scoped, tag = 'scoped memory for tpu_custom_call.1']
    #allocation4 [shape = 's32[1]{0}', space=sflag, size = 0x4, scoped, tag = 'scoped memory for tpu_custom_call.1']
    #allocation5 [shape = 'u8[40960]{0}', space=vmem, size = 0xa000, scoped, tag = 'output window, operand 0, single buffered']
    %8 = vsyncpa [#allocation3], 0
    %9 = vsyncpa [#allocation4], 0
    // Predicated region
    $region2: #{tpu_custom_call.1} parent=1 // pred_check
      _
    $region3: #{tpu_custom_call.1} parent=1 // pred_check_branch
      %11 = sbr.rel (0) target = $region5
    $region4: #{tpu_custom_call.1} parent=1 // pred_region
      %s13 = ssub.s32 1280, 1280
      %14 = vsyncadd [#allocation3], %s13
      %s15 = sshll.u32 [#allocation2], 4
      %s16 = int_to_ptr.vmem [resolvable:$true] %s15
      %21 = dma.hbm_to_vmem [thread:$0]  %s0, 1280, %s16, [#allocation3], 128, 128, 8
    $region5: #{tpu_custom_call.1} parent=1 // pred_fallthru
      _
    // Predicated region
    $region6: #{tpu_custom_call.1} parent=1 // pred_check
      _
    $region7: #{tpu_custom_call.1} parent=1 // pred_check_branch
      %23 = sbr.rel (0) target = $region9
    $region8: #{tpu_custom_call.1} parent=1 // pred_region
      _
    $region9: #{tpu_custom_call.1} parent=1 // pred_fallthru
      _
    // Predicated region
    $region10: #{tpu_custom_call.1} parent=1 // pred_check
      _
    $region11: #{tpu_custom_call.1} parent=1 // pred_check_branch
      %25 = sbr.rel (0) target = $region13
    $region12: #{tpu_custom_call.1} parent=1 // pred_region
      _
    $region13: #{tpu_custom_call.1} parent=1 // pred_fallthru
      _
    // Predicated region
    $region14: #{tpu_custom_call.1} parent=1 // pred_check
      _
    $region15: #{tpu_custom_call.1} parent=1 // pred_check_branch
      %27 = sbr.rel (0) target = $region17
    $region16: #{tpu_custom_call.1} parent=1 // pred_region
      %28 = dma.done [#allocation3], 1280
    $region17: #{tpu_custom_call.1} parent=1 // pred_fallthru
      _
    %v29 = vld [vmem:[#allocation2] sm:$0xff]
    %v30 = vld [vmem:[#allocation2 + $0x8] sm:$0xff]
    %v31 = vld [vmem:[#allocation2 + $0x10] sm:$0xff]
    %v32 = vld [vmem:[#allocation2 + $0x18] sm:$0xff]
    %v33 = vld [vmem:[#allocation2 + $0x20] sm:$0xff]
    %v34 = vld [vmem:[#allocation2 + $0x28] sm:$0xff]
    %v35 = vld [vmem:[#allocation2 + $0x30] sm:$0xff]
    %v36 = vld [vmem:[#allocation2 + $0x38] sm:$0xff]
    %v37 = vld [vmem:[#allocation2 + $0x40] sm:$0xff]
    %v38 = vld [vmem:[#allocation2 + $0x48] sm:$0xff]
    %v39 = vadd.f32 %v29, %v30
    %v40 = vadd.f32 %v39, %v31
    %v41 = vadd.f32 %v40, %v32
    %v42 = vadd.f32 %v41, %v33
    %v43 = vadd.f32 %v42, %v34
    %v44 = vadd.f32 %v43, %v35
    %v45 = vadd.f32 %v44, %v36
    %v46 = vadd.f32 %v45, %v37
    %v47 = vadd.f32 %v46, %v38
    %v48 = vrot.slane %v47, 4
    %v49 = vadd.f32 %v47, %v48
    %v50 = vrot.slane %v49, 2
    %v51 = vadd.f32 %v49, %v50
    %v52 = vrot.slane %v51, 1
    %v53 = vadd.f32 %v51, %v52
    %v54 = vmul.f32 %v53, 0.0125
    %v55 = vmul.f32 %v29, %v29
    %v56 = vmul.f32 %v30, %v30
    %v57 = vmul.f32 %v31, %v31
    %v58 = vmul.f32 %v32, %v32
    %v59 = vmul.f32 %v33, %v33
    %v60 = vmul.f32 %v34, %v34
    %v61 = vmul.f32 %v35, %v35
    %v62 = vmul.f32 %v36, %v36
    %v63 = vmul.f32 %v37, %v37
    %v64 = vmul.f32 %v38, %v38
    %v65 = vadd.f32 %v55, %v56
    %v66 = vadd.f32 %v65, %v57
    %v67 = vadd.f32 %v66, %v58
    %v68 = vadd.f32 %v67, %v59
    %v69 = vadd.f32 %v68, %v60
    %v70 = vadd.f32 %v69, %v61
    %v71 = vadd.f32 %v70, %v62
    %v72 = vadd.f32 %v71, %v63
    %v73 = vadd.f32 %v72, %v64
    %v74 = vrot.slane %v73, 4
    %v75 = vadd.f32 %v73, %v74
    %v76 = vrot.slane %v75, 2
    %v77 = vadd.f32 %v75, %v76
    %v78 = vrot.slane %v77, 1
    %v79 = vadd.f32 %v77, %v78
    %v80 = vmul.f32 %v79, 0.0125
    %v81 = vmul.f32 %v54, %v54
    %v82 = vsub.f32 %v80, %v81
    %v83 = vmax.f32 %v82, 0.0
    %v84 = vadd.f32 %v83, 1e-05
    %v85 = vrsqrt.pop %v84
    %v86 = vld [vmem:[%s1] sm:$0x1]
    %v87 = vmul.f32 %v85, %v86
    %v88 = vld [vmem:[%s2] sm:$0x1]
    %v89 = vmul.f32 %v54, %v87
    %v90 = vsub.f32 %v88, %v89
    %v91 = vlaneseq
    %v92 = vshrl.u32 %v91, 7
    %v93 = vsub.s32 0, %v92
    %v94 = vrot.slane %v87, %v93
    %v95 = vmul.f32 %v29, %v94
    %v96 = vmul.f32 %v30, %v94
    %v97 = vmul.f32 %v31, %v94
    %v98 = vmul.f32 %v32, %v94
    %v99 = vmul.f32 %v33, %v94
    %v100 = vmul.f32 %v34, %v94
    %v101 = vmul.f32 %v35, %v94
    %v102 = vmul.f32 %v36, %v94
    %v103 = vmul.f32 %v37, %v94
    %v104 = vmul.f32 %v38, %v94
    %v106 = vlaneseq
    %v107 = vshrl.u32 %v106, 7
    %v108 = vsub.s32 0, %v107
    %v109 = vrot.slane %v90, %v108
    %v111 = vadd.f32 %v95, %v109
    %v112 = vadd.f32 %v96, %v109
    %v113 = vadd.f32 %v97, %v109
    %v114 = vadd.f32 %v98, %v109
    %v115 = vadd.f32 %v99, %v109
    %v116 = vadd.f32 %v100, %v109
    %v117 = vadd.f32 %v101, %v109
    %v118 = vadd.f32 %v102, %v109
    %v119 = vadd.f32 %v103, %v109
    %v120 = vadd.f32 %v104, %v109
    %121 = vst [vmem:[#allocation5] sm:$0xff] %v111
    %122 = vst [vmem:[#allocation5 + $0x8] sm:$0xff] %v112
    %123 = vst [vmem:[#allocation5 + $0x10] sm:$0xff] %v113
    %124 = vst [vmem:[#allocation5 + $0x18] sm:$0xff] %v114
    %125 = vst [vmem:[#allocation5 + $0x20] sm:$0xff] %v115
    %126 = vst [vmem:[#allocation5 + $0x28] sm:$0xff] %v116
    %127 = vst [vmem:[#allocation5 + $0x30] sm:$0xff] %v117
    %128 = vst [vmem:[#allocation5 + $0x38] sm:$0xff] %v118
    %129 = vst [vmem:[#allocation5 + $0x40] sm:$0xff] %v119
    %130 = vst [vmem:[#allocation5 + $0x48] sm:$0xff] %v120
    // Predicated region
    $region18: #{tpu_custom_call.1} parent=1 // pred_check
      _
    $region19: #{tpu_custom_call.1} parent=1 // pred_check_branch
      %132 = sbr.rel (0) target = $region21
    $region20: #{tpu_custom_call.1} parent=1 // pred_region
      %s134 = ssub.s32 1280, 1280
      %135 = vsyncadd [#allocation4], %s134
      %s136 = sshll.u32 [#allocation5], 4
      %s137 = int_to_ptr.vmem [resolvable:$true] %s136
      %142 = dma.vmem_to_hbm [thread:$0]  %s137, 1280, %s3, [#allocation4], 128, 128, 8
    $region21: #{tpu_custom_call.1} parent=1 // pred_fallthru
      _
    // Predicated region
    $region22: #{tpu_custom_call.1} parent=1 // pred_check
      _
    $region23: #{tpu_custom_call.1} parent=1 // pred_check_branch
      %144 = sbr.rel (0) target = $region25
    $region24: #{tpu_custom_call.1} parent=1 // pred_region
      %145 = dma.done [#allocation4], 1280
    $region25: #{tpu_custom_call.1} parent=1 // pred_fallthru
      _
    %146 = vsyncpa [#allocation3], 1
    %147 = vsyncpa [#allocation4], 1

</llo_original>
